<compile_context>
chip_gen: v5e
topology: v5e:2x2
jax: 0.10.0
libtpu: 0.0.40
codegen_flags: <defaults>
</compile_context>

<pallas_src>
import jax
import jax.numpy as jnp
import numpy as np
from jax.experimental import pallas as pl
from jax.experimental.pallas import tpu as pltpu  # noqa: F401  (TPU backend)

# Small, module-consistent sizes.
D_MODEL = 32
N_HEAD = 4
HEAD_DIM = D_MODEL // N_HEAD
SEQ = 8
BATCH = 2
ROWS = SEQ * BATCH
LN_EPS = 1e-5  # nn.LayerNorm default

_NEG_BIG = -1e30  # additive mask value (exp underflows to exactly 0 in f32)


def _layernorm(x, w, b):
    mu = jnp.mean(x, axis=-1, keepdims=True)
    xc = x - mu
    var = jnp.mean(xc * xc, axis=-1, keepdims=True)
    return xc * jax.lax.rsqrt(var + LN_EPS) * w + b


def residual_block_kernel(x_ref, vecs_ref, wq_ref, wk_ref, wv_ref, w_out_ref,
                          w_fc_ref, b_fc_ref, w_proj_ref, bias_ref, o_ref):
    f32 = jnp.float32
    x = x_ref[...]            # (R, D) with R = SEQ*BATCH, rows ordered (seq, batch)
    vecs = vecs_ref[...]      # (9 + H, D) packed LN/bias vectors + head channel masks
    ln1_w, ln1_b = vecs[0:1, :], vecs[1:2, :]
    bq, bk, bv = vecs[2:3, :], vecs[3:4, :], vecs[4:5, :]
    b_out = vecs[5:6, :]
    ln2_w, ln2_b = vecs[6:7, :], vecs[7:8, :]
    b_proj = vecs[8:9, :]
    head_mask = vecs[9:9 + N_HEAD, :]   # (H, D) 0/1 selector of each head's channels

    # ---- ln_1 + multi-head self-attention --------------------------------
    h = _layernorm(x, ln1_w, ln1_b)
    # 1/sqrt(head_dim) is pre-folded into wq / bq at parameter-prep time.
    q = jnp.dot(h, wq_ref[...], preferred_element_type=f32) + bq
    k = jnp.dot(h, wk_ref[...], preferred_element_type=f32) + bk
    v = jnp.dot(h, wv_ref[...], preferred_element_type=f32) + bv

    # Head-masked Q stacked along sublanes: block h = q restricted to head-h channels.
    qm = jnp.concatenate([q * head_mask[hh:hh + 1, :] for hh in range(N_HEAD)],
                         axis=0)                                         # (H*R, D)

    # One full-width matmul for all heads' scores (contract the channel axis of K
    # directly, no explicit transpose op).  The additive bias keeps the packed rows
    # block-diagonal over batch; attn_mask (None here) would be folded into it too.
    s = jax.lax.dot_general(qm, k, (((1,), (1,)), ((), ())),
                            preferred_element_type=f32)                  # (H*R, R)
    s = s + bias_ref[...]
    s = s - jnp.max(s, axis=-1, keepdims=True)
    p = jnp.exp(s)
    p = p * pl.reciprocal(jnp.sum(p, axis=-1, keepdims=True), approx=True)

    # One matmul for all heads' context; each head keeps only its own channels.
    ctx_all = jnp.dot(p, v, preferred_element_type=f32)                  # (H*R, D)
    ctx = ctx_all[0:ROWS, :] * head_mask[0:1, :]
    for hh in range(1, N_HEAD):
        ctx = ctx + ctx_all[hh * ROWS:(hh + 1) * ROWS, :] * head_mask[hh:hh + 1, :]

    attn_out = jnp.dot(ctx, w_out_ref[...], preferred_element_type=f32) + b_out
    x1 = x + attn_out

    # ---- ln_2 + MLP (c_fc -> QuickGELU -> c_proj) -------------------------
    h2 = _layernorm(x1, ln2_w, ln2_b)
    fc = jnp.dot(h2, w_fc_ref[...], preferred_element_type=f32) + b_fc_ref[...]
    g = fc * jax.nn.sigmoid(1.702 * fc)   # QuickGELU
    mlp = jnp.dot(g, w_proj_ref[...], preferred_element_type=f32) + b_proj

    o_ref[...] = x1 + mlp


def prepare_kernel_params(params):
    """One-time host-side parameter transform into kernel-ready layout."""
    D = D_MODEL
    scale = 1.0 / float(np.sqrt(HEAD_DIM))
    in_w = params["in_proj_w"]   # (3D, D)
    in_b = params["in_proj_b"]   # (3D,)
    wq = in_w[:D].T * scale      # fold 1/sqrt(head_dim) into the Q projection
    wk = in_w[D:2 * D].T
    wv = in_w[2 * D:].T

    # Per-head channel masks (H, D).
    head_mask = np.zeros((N_HEAD, D), np.float32)
    for hh in range(N_HEAD):
        head_mask[hh, hh * HEAD_DIM:(hh + 1) * HEAD_DIM] = 1.0

    vecs = jnp.concatenate([
        jnp.stack([
            params["ln1_w"], params["ln1_b"],
            in_b[:D] * scale, in_b[D:2 * D], in_b[2 * D:],
            params["out_proj_b"], params["ln2_w"], params["ln2_b"], params["proj_b"],
        ], axis=0),
        jnp.asarray(head_mask),
    ], axis=0).astype(jnp.float32)                                   # (9 + H, D)

    # Block-diagonal (over batch) additive bias for the packed (seq, batch) rows,
    # tiled over the H row-blocks of the stacked score matrix.  attn_mask is None for
    # this module instance; a non-None mask would be added here.
    r = np.arange(ROWS)
    same_batch = (r[:, None] % BATCH) == (r[None, :] % BATCH)
    attn_bias = np.where(same_batch, 0.0, _NEG_BIG).astype(np.float32)       # (R, R)
    attn_bias_all = jnp.asarray(np.tile(attn_bias, (N_HEAD, 1)))             # (H*R, R)

    return (vecs, wq, wk, wv,
            params["out_proj_w"].T,            # (D, D)
            params["fc_w"].T,                  # (D, 4D)
            params["fc_b"].reshape(1, -1),     # (1, 4D) — already 128-lane aligned
            params["proj_w"].T,                # (4D, D)
            attn_bias_all)                     # (H*R, R)


@jax.jit
def residual_attention_block(x_lnd, kparams):
    """x_lnd: (L, N, D) float32 — PyTorch MultiheadAttention default layout."""
    L, N, D = x_lnd.shape
    assert (L, N, D) == (SEQ, BATCH, D_MODEL)
    # Free row-major flatten: row r = (l, n).  No wrapper transposes needed.
    x2d = x_lnd.reshape(L * N, D)
    out2d = pl.pallas_call(
        residual_block_kernel,
        out_shape=jax.ShapeDtypeStruct((L * N, D), x_lnd.dtype),
    )(x2d, *kparams)
    return out2d.reshape(L, N, D)


def make_params(key):
    ks = jax.random.split(key, 8)
    s = 0.02
    return {
        "ln1_w": jnp.ones((D_MODEL,), jnp.float32),
        "ln1_b": jnp.zeros((D_MODEL,), jnp.float32),
        "in_proj_w": s * jax.random.normal(ks[0], (3 * D_MODEL, D_MODEL), jnp.float32),
        "in_proj_b": s * jax.random.normal(ks[1], (3 * D_MODEL,), jnp.float32),
        "out_proj_w": s * jax.random.normal(ks[2], (D_MODEL, D_MODEL), jnp.float32),
        "out_proj_b": s * jax.random.normal(ks[3], (D_MODEL,), jnp.float32),
        "ln2_w": jnp.ones((D_MODEL,), jnp.float32),
        "ln2_b": jnp.zeros((D_MODEL,), jnp.float32),
        "fc_w": s * jax.random.normal(ks[4], (4 * D_MODEL, D_MODEL), jnp.float32),
        "fc_b": s * jax.random.normal(ks[5], (4 * D_MODEL,), jnp.float32),
        "proj_w": s * jax.random.normal(ks[6], (D_MODEL, 4 * D_MODEL), jnp.float32),
        "proj_b": s * jax.random.normal(ks[7], (D_MODEL,), jnp.float32),
    }


def reference(x_lnd, p):
    """Pure-JAX reference mirroring the PyTorch module (for verification)."""
    L, N, D = x_lnd.shape

    def ln(x, w, b):
        mu = x.mean(-1, keepdims=True)
        var = ((x - mu) ** 2).mean(-1, keepdims=True)
        return (x - mu) / jnp.sqrt(var + LN_EPS) * w + b

    h = ln(x_lnd, p["ln1_w"], p["ln1_b"])
    qkv = h @ p["in_proj_w"].T + p["in_proj_b"]
    q, k, v = jnp.split(qkv, 3, axis=-1)

    def to_heads(t):
        return t.reshape(L, N, N_HEAD, HEAD_DIM).transpose(1, 2, 0, 3)  # (N,H,L,Hd)

    qh = to_heads(q) / np.sqrt(HEAD_DIM)
    kh = to_heads(k)
    vh = to_heads(v)
    s = jnp.einsum("nhld,nhmd->nhlm", qh, kh)
    pa = jax.nn.softmax(s, axis=-1)
    ctx = jnp.einsum("nhlm,nhmd->nhld", pa, vh)
    ctx = ctx.transpose(2, 0, 1, 3).reshape(L, N, D)
    attn_out = ctx @ p["out_proj_w"].T + p["out_proj_b"]
    x1 = x_lnd + attn_out
    h2 = ln(x1, p["ln2_w"], p["ln2_b"])
    fc = h2 @ p["fc_w"].T + p["fc_b"]
    g = fc * jax.nn.sigmoid(1.702 * fc)
    return x1 + g @ p["proj_w"].T + p["proj_b"]


if __name__ == "__main__":
    key = jax.random.PRNGKey(0)
    kx, kp = jax.random.split(key)
    x = jax.random.normal(kx, (SEQ, BATCH, D_MODEL), jnp.float32)  # (L, N, D)
    params = make_params(kp)
    kparams = prepare_kernel_params(params)  # one-time parameter transform

    out = residual_attention_block(x, kparams)
    out = jax.block_until_ready(out)

    ref = reference(x, params)
    np.testing.assert_allclose(np.asarray(out), np.asarray(ref), rtol=1e-3, atol=1e-3)

    print("KERNEL_OK")
</pallas_src>

<mosaic_0001>
module attributes {stable_mosaic.version = 11 : i64} {
  func.func @residual_block_kernel(%arg0: memref<16x32xf32, #tpu.memory_space<vmem>>, %arg1: memref<13x32xf32, #tpu.memory_space<vmem>>, %arg2: memref<32x32xf32, #tpu.memory_space<vmem>>, %arg3: memref<32x32xf32, #tpu.memory_space<vmem>>, %arg4: memref<32x32xf32, #tpu.memory_space<vmem>>, %arg5: memref<32x32xf32, #tpu.memory_space<vmem>>, %arg6: memref<32x128xf32, #tpu.memory_space<vmem>>, %arg7: memref<1x128xf32, #tpu.memory_space<vmem>>, %arg8: memref<128x32xf32, #tpu.memory_space<vmem>>, %arg9: memref<64x16xf32, #tpu.memory_space<vmem>>, %arg10: memref<16x32xf32, #tpu.memory_space<vmem>>) attributes {dimension_semantics = [], scalar_prefetch = 0 : i64, scratch_operands = 0 : i64, tpu.core_type = #tpu.core_type<tc>} {
    %c0 = arith.constant 0 : index
    %c0_0 = arith.constant 0 : index
    %0 = vector.load %arg0[%c0, %c0_0] : memref<16x32xf32, #tpu.memory_space<vmem>>, vector<16x32xf32>
    %c0_1 = arith.constant 0 : index
    %c0_2 = arith.constant 0 : index
    %1 = vector.load %arg1[%c0_1, %c0_2] : memref<13x32xf32, #tpu.memory_space<vmem>>, vector<13x32xf32>
    %2 = vector.extract_strided_slice %1 {offsets = [0, 0], sizes = [1, 32], strides = [1, 1]} : vector<13x32xf32> to vector<1x32xf32>
    %3 = vector.extract_strided_slice %1 {offsets = [1, 0], sizes = [1, 32], strides = [1, 1]} : vector<13x32xf32> to vector<1x32xf32>
    %4 = vector.extract_strided_slice %1 {offsets = [2, 0], sizes = [1, 32], strides = [1, 1]} : vector<13x32xf32> to vector<1x32xf32>
    %5 = vector.extract_strided_slice %1 {offsets = [3, 0], sizes = [1, 32], strides = [1, 1]} : vector<13x32xf32> to vector<1x32xf32>
    %6 = vector.extract_strided_slice %1 {offsets = [4, 0], sizes = [1, 32], strides = [1, 1]} : vector<13x32xf32> to vector<1x32xf32>
    %7 = vector.extract_strided_slice %1 {offsets = [5, 0], sizes = [1, 32], strides = [1, 1]} : vector<13x32xf32> to vector<1x32xf32>
    %8 = vector.extract_strided_slice %1 {offsets = [6, 0], sizes = [1, 32], strides = [1, 1]} : vector<13x32xf32> to vector<1x32xf32>
    %9 = vector.extract_strided_slice %1 {offsets = [7, 0], sizes = [1, 32], strides = [1, 1]} : vector<13x32xf32> to vector<1x32xf32>
    %10 = vector.extract_strided_slice %1 {offsets = [8, 0], sizes = [1, 32], strides = [1, 1]} : vector<13x32xf32> to vector<1x32xf32>
    %11 = vector.extract_strided_slice %1 {offsets = [9, 0], sizes = [4, 32], strides = [1, 1]} : vector<13x32xf32> to vector<4x32xf32>
    %cst = arith.constant dense<0.000000e+00> : vector<16xf32>
    %12 = vector.multi_reduction <add>, %0, %cst [1] : vector<16x32xf32> to vector<16xf32>
    %13 = vector.shape_cast %12 : vector<16xf32> to vector<16x1xf32>
    %cst_3 = arith.constant 3.200000e+01 : f32
    %14 = vector.broadcast %cst_3 : f32 to vector<16x1xf32>
    %15 = arith.divf %13, %14 : vector<16x1xf32>
    %16 = vector.broadcast %15 : vector<16x1xf32> to vector<16x32xf32>
    %17 = arith.subf %0, %16 : vector<16x32xf32>
    %18 = arith.mulf %17, %17 : vector<16x32xf32>
    %cst_4 = arith.constant dense<0.000000e+00> : vector<16xf32>
    %19 = vector.multi_reduction <add>, %18, %cst_4 [1] : vector<16x32xf32> to vector<16xf32>
    %20 = vector.shape_cast %19 : vector<16xf32> to vector<16x1xf32>
    %cst_5 = arith.constant 3.200000e+01 : f32
    %21 = vector.broadcast %cst_5 : f32 to vector<16x1xf32>
    %22 = arith.divf %20, %21 : vector<16x1xf32>
    %cst_6 = arith.constant 9.99999974E-6 : f32
    %23 = vector.broadcast %cst_6 : f32 to vector<16x1xf32>
    %24 = arith.addf %22, %23 : vector<16x1xf32>
    %25 = math.rsqrt %24 : vector<16x1xf32>
    %26 = vector.broadcast %25 : vector<16x1xf32> to vector<16x32xf32>
    %27 = arith.mulf %17, %26 : vector<16x32xf32>
    %28 = vector.broadcast %2 : vector<1x32xf32> to vector<16x32xf32>
    %29 = arith.mulf %27, %28 : vector<16x32xf32>
    %30 = vector.broadcast %3 : vector<1x32xf32> to vector<16x32xf32>
    %31 = arith.addf %29, %30 : vector<16x32xf32>
    %c0_7 = arith.constant 0 : index
    %c0_8 = arith.constant 0 : index
    %32 = vector.load %arg2[%c0_7, %c0_8] : memref<32x32xf32, #tpu.memory_space<vmem>>, vector<32x32xf32>
    %cst_9 = arith.constant dense<0.000000e+00> : vector<16x32xf32>
    %33 = tpu.matmul %31, %32, %cst_9 {dimension_numbers = #tpu.dot_dimension_numbers<[1], [0], [0], [1], [0, 0, 1, 1], [], []>} : vector<16x32xf32>, vector<32x32xf32>, vector<16x32xf32> -> vector<16x32xf32>
    %34 = vector.broadcast %4 : vector<1x32xf32> to vector<16x32xf32>
    %35 = arith.addf %33, %34 : vector<16x32xf32>
    %c0_10 = arith.constant 0 : index
    %c0_11 = arith.constant 0 : index
    %36 = vector.load %arg3[%c0_10, %c0_11] : memref<32x32xf32, #tpu.memory_space<vmem>>, vector<32x32xf32>
    %cst_12 = arith.constant dense<0.000000e+00> : vector<16x32xf32>
    %37 = tpu.matmul %31, %36, %cst_12 {dimension_numbers = #tpu.dot_dimension_numbers<[1], [0], [0], [1], [0, 0, 1, 1], [], []>} : vector<16x32xf32>, vector<32x32xf32>, vector<16x32xf32> -> vector<16x32xf32>
    %38 = vector.broadcast %5 : vector<1x32xf32> to vector<16x32xf32>
    %39 = arith.addf %37, %38 : vector<16x32xf32>
    %c0_13 = arith.constant 0 : index
    %c0_14 = arith.constant 0 : index
    %40 = vector.load %arg4[%c0_13, %c0_14] : memref<32x32xf32, #tpu.memory_space<vmem>>, vector<32x32xf32>
    %cst_15 = arith.constant dense<0.000000e+00> : vector<16x32xf32>
    %41 = tpu.matmul %31, %40, %cst_15 {dimension_numbers = #tpu.dot_dimension_numbers<[1], [0], [0], [1], [0, 0, 1, 1], [], []>} : vector<16x32xf32>, vector<32x32xf32>, vector<16x32xf32> -> vector<16x32xf32>
    %42 = vector.broadcast %6 : vector<1x32xf32> to vector<16x32xf32>
    %43 = arith.addf %41, %42 : vector<16x32xf32>
    %44 = vector.extract_strided_slice %11 {offsets = [0, 0], sizes = [1, 32], strides = [1, 1]} : vector<4x32xf32> to vector<1x32xf32>
    %45 = vector.broadcast %44 : vector<1x32xf32> to vector<16x32xf32>
    %46 = arith.mulf %35, %45 : vector<16x32xf32>
    %47 = vector.extract_strided_slice %11 {offsets = [1, 0], sizes = [1, 32], strides = [1, 1]} : vector<4x32xf32> to vector<1x32xf32>
    %48 = vector.broadcast %47 : vector<1x32xf32> to vector<16x32xf32>
    %49 = arith.mulf %35, %48 : vector<16x32xf32>
    %50 = vector.extract_strided_slice %11 {offsets = [2, 0], sizes = [1, 32], strides = [1, 1]} : vector<4x32xf32> to vector<1x32xf32>
    %51 = vector.broadcast %50 : vector<1x32xf32> to vector<16x32xf32>
    %52 = arith.mulf %35, %51 : vector<16x32xf32>
    %53 = vector.extract_strided_slice %11 {offsets = [3, 0], sizes = [1, 32], strides = [1, 1]} : vector<4x32xf32> to vector<1x32xf32>
    %54 = vector.broadcast %53 : vector<1x32xf32> to vector<16x32xf32>
    %55 = arith.mulf %35, %54 : vector<16x32xf32>
    %56 = tpu.concatenate %46, %49, %52, %55 in 0 : vector<16x32xf32>, vector<16x32xf32>, vector<16x32xf32>, vector<16x32xf32> -> vector<64x32xf32>
    %cst_16 = arith.constant dense<0.000000e+00> : vector<64x16xf32>
    %57 = tpu.matmul %56, %39, %cst_16 {dimension_numbers = #tpu.dot_dimension_numbers<[1], [1], [0], [0], [0, 0, 1, 0], [], []>} : vector<64x32xf32>, vector<16x32xf32>, vector<64x16xf32> -> vector<64x16xf32>
    %c0_17 = arith.constant 0 : index
    %c0_18 = arith.constant 0 : index
    %58 = vector.load %arg9[%c0_17, %c0_18] : memref<64x16xf32, #tpu.memory_space<vmem>>, vector<64x16xf32>
    %59 = arith.addf %57, %58 : vector<64x16xf32>
    %cst_19 = arith.constant dense<0xFF800000> : vector<64xf32>
    %60 = vector.multi_reduction <maximumf>, %59, %cst_19 [1] : vector<64x16xf32> to vector<64xf32>
    %61 = vector.shape_cast %60 : vector<64xf32> to vector<64x1xf32>
    %62 = vector.broadcast %61 : vector<64x1xf32> to vector<64x16xf32>
    %63 = arith.subf %59, %62 : vector<64x16xf32>
    %64 = math.exp %63 : vector<64x16xf32>
    %cst_20 = arith.constant dense<0.000000e+00> : vector<64xf32>
    %65 = vector.multi_reduction <add>, %64, %cst_20 [1] : vector<64x16xf32> to vector<64xf32>
    %66 = vector.shape_cast %65 : vector<64xf32> to vector<64x1xf32>
    %67 = tpu.reciprocal %66 {approx = true} : vector<64x1xf32> -> vector<64x1xf32>
    %68 = vector.broadcast %67 : vector<64x1xf32> to vector<64x16xf32>
    %69 = arith.mulf %64, %68 : vector<64x16xf32>
    %cst_21 = arith.constant dense<0.000000e+00> : vector<64x32xf32>
    %70 = tpu.matmul %69, %43, %cst_21 {dimension_numbers = #tpu.dot_dimension_numbers<[1], [0], [0], [1], [0, 0, 1, 1], [], []>} : vector<64x16xf32>, vector<16x32xf32>, vector<64x32xf32> -> vector<64x32xf32>
    %71 = vector.extract_strided_slice %70 {offsets = [0, 0], sizes = [16, 32], strides = [1, 1]} : vector<64x32xf32> to vector<16x32xf32>
    %72 = vector.extract_strided_slice %11 {offsets = [0, 0], sizes = [1, 32], strides = [1, 1]} : vector<4x32xf32> to vector<1x32xf32>
    %73 = vector.broadcast %72 : vector<1x32xf32> to vector<16x32xf32>
    %74 = arith.mulf %71, %73 : vector<16x32xf32>
    %75 = vector.extract_strided_slice %70 {offsets = [16, 0], sizes = [16, 32], strides = [1, 1]} : vector<64x32xf32> to vector<16x32xf32>
    %76 = vector.extract_strided_slice %11 {offsets = [1, 0], sizes = [1, 32], strides = [1, 1]} : vector<4x32xf32> to vector<1x32xf32>
    %77 = vector.broadcast %76 : vector<1x32xf32> to vector<16x32xf32>
    %78 = arith.mulf %75, %77 : vector<16x32xf32>
    %79 = arith.addf %74, %78 : vector<16x32xf32>
    %80 = vector.extract_strided_slice %70 {offsets = [32, 0], sizes = [16, 32], strides = [1, 1]} : vector<64x32xf32> to vector<16x32xf32>
    %81 = vector.extract_strided_slice %11 {offsets = [2, 0], sizes = [1, 32], strides = [1, 1]} : vector<4x32xf32> to vector<1x32xf32>
    %82 = vector.broadcast %81 : vector<1x32xf32> to vector<16x32xf32>
    %83 = arith.mulf %80, %82 : vector<16x32xf32>
    %84 = arith.addf %79, %83 : vector<16x32xf32>
    %85 = vector.extract_strided_slice %70 {offsets = [48, 0], sizes = [16, 32], strides = [1, 1]} : vector<64x32xf32> to vector<16x32xf32>
    %86 = vector.extract_strided_slice %11 {offsets = [3, 0], sizes = [1, 32], strides = [1, 1]} : vector<4x32xf32> to vector<1x32xf32>
    %87 = vector.broadcast %86 : vector<1x32xf32> to vector<16x32xf32>
    %88 = arith.mulf %85, %87 : vector<16x32xf32>
    %89 = arith.addf %84, %88 : vector<16x32xf32>
    %c0_22 = arith.constant 0 : index
    %c0_23 = arith.constant 0 : index
    %90 = vector.load %arg5[%c0_22, %c0_23] : memref<32x32xf32, #tpu.memory_space<vmem>>, vector<32x32xf32>
    %cst_24 = arith.constant dense<0.000000e+00> : vector<16x32xf32>
    %91 = tpu.matmul %89, %90, %cst_24 {dimension_numbers = #tpu.dot_dimension_numbers<[1], [0], [0], [1], [0, 0, 1, 1], [], []>} : vector<16x32xf32>, vector<32x32xf32>, vector<16x32xf32> -> vector<16x32xf32>
    %92 = vector.broadcast %7 : vector<1x32xf32> to vector<16x32xf32>
    %93 = arith.addf %91, %92 : vector<16x32xf32>
    %94 = arith.addf %0, %93 : vector<16x32xf32>
    %cst_25 = arith.constant dense<0.000000e+00> : vector<16xf32>
    %95 = vector.multi_reduction <add>, %94, %cst_25 [1] : vector<16x32xf32> to vector<16xf32>
    %96 = vector.shape_cast %95 : vector<16xf32> to vector<16x1xf32>
    %cst_26 = arith.constant 3.200000e+01 : f32
    %97 = vector.broadcast %cst_26 : f32 to vector<16x1xf32>
    %98 = arith.divf %96, %97 : vector<16x1xf32>
    %99 = vector.broadcast %98 : vector<16x1xf32> to vector<16x32xf32>
    %100 = arith.subf %94, %99 : vector<16x32xf32>
    %101 = arith.mulf %100, %100 : vector<16x32xf32>
    %cst_27 = arith.constant dense<0.000000e+00> : vector<16xf32>
    %102 = vector.multi_reduction <add>, %101, %cst_27 [1] : vector<16x32xf32> to vector<16xf32>
    %103 = vector.shape_cast %102 : vector<16xf32> to vector<16x1xf32>
    %cst_28 = arith.constant 3.200000e+01 : f32
    %104 = vector.broadcast %cst_28 : f32 to vector<16x1xf32>
    %105 = arith.divf %103, %104 : vector<16x1xf32>
    %cst_29 = arith.constant 9.99999974E-6 : f32
    %106 = vector.broadcast %cst_29 : f32 to vector<16x1xf32>
    %107 = arith.addf %105, %106 : vector<16x1xf32>
    %108 = math.rsqrt %107 : vector<16x1xf32>
    %109 = vector.broadcast %108 : vector<16x1xf32> to vector<16x32xf32>
    %110 = arith.mulf %100, %109 : vector<16x32xf32>
    %111 = vector.broadcast %8 : vector<1x32xf32> to vector<16x32xf32>
    %112 = arith.mulf %110, %111 : vector<16x32xf32>
    %113 = vector.broadcast %9 : vector<1x32xf32> to vector<16x32xf32>
    %114 = arith.addf %112, %113 : vector<16x32xf32>
    %c0_30 = arith.constant 0 : index
    %c0_31 = arith.constant 0 : index
    %115 = vector.load %arg6[%c0_30, %c0_31] : memref<32x128xf32, #tpu.memory_space<vmem>>, vector<32x128xf32>
    %cst_32 = arith.constant dense<0.000000e+00> : vector<16x128xf32>
    %116 = tpu.matmul %114, %115, %cst_32 {dimension_numbers = #tpu.dot_dimension_numbers<[1], [0], [0], [1], [0, 0, 1, 1], [], []>} : vector<16x32xf32>, vector<32x128xf32>, vector<16x128xf32> -> vector<16x128xf32>
    %c0_33 = arith.constant 0 : index
    %c0_34 = arith.constant 0 : index
    %117 = vector.load %arg7[%c0_33, %c0_34] : memref<1x128xf32, #tpu.memory_space<vmem>>, vector<1x128xf32>
    %118 = vector.broadcast %117 : vector<1x128xf32> to vector<16x128xf32>
    %119 = arith.addf %116, %118 : vector<16x128xf32>
    %cst_35 = arith.constant 1.702000e+00 : f32
    %120 = vector.broadcast %cst_35 : f32 to vector<16x128xf32>
    %121 = arith.mulf %120, %119 : vector<16x128xf32>
    %122 = arith.negf %121 : vector<16x128xf32>
    %123 = math.exp %122 : vector<16x128xf32>
    %cst_36 = arith.constant 1.000000e+00 : f32
    %124 = vector.broadcast %cst_36 : f32 to vector<16x128xf32>
    %125 = arith.addf %124, %123 : vector<16x128xf32>
    %126 = arith.divf %124, %125 : vector<16x128xf32>
    %127 = arith.mulf %119, %126 : vector<16x128xf32>
    %c0_37 = arith.constant 0 : index
    %c0_38 = arith.constant 0 : index
    %128 = vector.load %arg8[%c0_37, %c0_38] : memref<128x32xf32, #tpu.memory_space<vmem>>, vector<128x32xf32>
    %cst_39 = arith.constant dense<0.000000e+00> : vector<16x32xf32>
    %129 = tpu.matmul %127, %128, %cst_39 {dimension_numbers = #tpu.dot_dimension_numbers<[1], [0], [0], [1], [0, 0, 1, 1], [], []>} : vector<16x128xf32>, vector<128x32xf32>, vector<16x32xf32> -> vector<16x32xf32>
    %130 = vector.broadcast %10 : vector<1x32xf32> to vector<16x32xf32>
    %131 = arith.addf %129, %130 : vector<16x32xf32>
    %132 = arith.addf %94, %131 : vector<16x32xf32>
    %c0_40 = arith.constant 0 : index
    %c0_41 = arith.constant 0 : index
    %133 = vector.load %arg10[%c0_40, %c0_41] : memref<16x32xf32, #tpu.memory_space<vmem>>, vector<16x32xf32>
    tpu.vector_store %arg10[%c0_40, %c0_41], %132 {strides = array<i32>} : memref<16x32xf32, #tpu.memory_space<vmem>>, vector<16x32xf32>,
    return
  }
}

</mosaic_0001>

<llo_original>
// kernel: residual_attention_block.1
$region0: #{residual_attention_block.1}
  #allocation0 [shape = 'u32[]', space=smem, size = 0x4, offset = 0x4, fixed_abs, tag = 'smem constant byte address 0x4 - core index']
  #allocation1 [shape = 'u32[72,128]{1,0:T(1,128)}', space=vmem, size = 0x9000, scoped, tag = 'internal scratch']
  %s0 = inlined_call_operand.vmem [shape: f32[16,32], index: 0, kind: input, shape index: {}]
  %s1 = inlined_call_operand.vmem [shape: f32[13,32], index: 1, kind: input, shape index: {}]
  %s2 = inlined_call_operand.vmem [shape: f32[32,32], index: 2, kind: input, shape index: {}]
  %s3 = inlined_call_operand.vmem [shape: f32[32,32], index: 3, kind: input, shape index: {}]
  %s4 = inlined_call_operand.vmem [shape: f32[32,32], index: 4, kind: input, shape index: {}]
  %s5 = inlined_call_operand.vmem [shape: f32[32,32], index: 5, kind: input, shape index: {}]
  %s6 = inlined_call_operand.vmem [shape: f32[32,128], index: 6, kind: input, shape index: {}]
  %s7 = inlined_call_operand.vmem [shape: f32[1,128], index: 7, kind: input, shape index: {}]
  %s8 = inlined_call_operand.vmem [shape: f32[128,32], index: 8, kind: input, shape index: {}]
  %s9 = inlined_call_operand.vmem [shape: f32[64,16], index: 9, kind: input, shape index: {}]
  %s10 = inlined_call_operand.hbm [shape: f32[16,32], index: 10, kind: output, shape index: {}]
  %s11 = sld [smem:[#allocation0]]
  $region50: #{residual_attention_block.1} parent=0
    _
  %s13 = ssub.s32 1, %s11
  %s14 = scalar_select 0, %s13, %s11
  $region1: #{residual_attention_block.1} parent=0
    #allocation2 [shape = 'u8[8192]{0}', space=vmem, size = 0x2000, scoped, tag = 'output window, operand 0, single buffered']
    #allocation3 [shape = 's32[1]{0}', space=sflag, size = 0x4, scoped, tag = 'scoped memory for residual_attention_block.1']
    %15 = vsyncpa [#allocation3], 0
    // Predicated region
    $region2: #{residual_attention_block.1} parent=1 // pred_check
      _
    $region3: #{residual_attention_block.1} parent=1 // pred_check_branch
      %17 = sbr.rel (0) target = $region5
    $region4: #{residual_attention_block.1} parent=1 // pred_region
      _
    $region5: #{residual_attention_block.1} parent=1 // pred_fallthru
      _
    // Predicated region
    $region6: #{residual_attention_block.1} parent=1 // pred_check
      _
    $region7: #{residual_attention_block.1} parent=1 // pred_check_branch
      %19 = sbr.rel (0) target = $region9
    $region8: #{residual_attention_block.1} parent=1 // pred_region
      _
    $region9: #{residual_attention_block.1} parent=1 // pred_fallthru
      _
    // Predicated region
    $region10: #{residual_attention_block.1} parent=1 // pred_check
      _
    $region11: #{residual_attention_block.1} parent=1 // pred_check_branch
      %21 = sbr.rel (0) target = $region13
    $region12: #{residual_attention_block.1} parent=1 // pred_region
      _
    $region13: #{residual_attention_block.1} parent=1 // pred_fallthru
      _
    // Predicated region
    $region14: #{residual_attention_block.1} parent=1 // pred_check
      _
    $region15: #{residual_attention_block.1} parent=1 // pred_check_branch
      %23 = sbr.rel (0) target = $region17
    $region16: #{residual_attention_block.1} parent=1 // pred_region
      _
    $region17: #{residual_attention_block.1} parent=1 // pred_fallthru
      _
    // Predicated region
    $region18: #{residual_attention_block.1} parent=1 // pred_check
      _
    $region19: #{residual_attention_block.1} parent=1 // pred_check_branch
      %25 = sbr.rel (0) target = $region21
    $region20: #{residual_attention_block.1} parent=1 // pred_region
      _
    $region21: #{residual_attention_block.1} parent=1 // pred_fallthru
      _
    // Predicated region
    $region22: #{residual_attention_block.1} parent=1 // pred_check
      _
    $region23: #{residual_attention_block.1} parent=1 // pred_check_branch
      %27 = sbr.rel (0) target = $region25
    $region24: #{residual_attention_block.1} parent=1 // pred_region
      _
    $region25: #{residual_attention_block.1} parent=1 // pred_fallthru
      _
    // Predicated region
    $region26: #{residual_attention_block.1} parent=1 // pred_check
      _
    $region27: #{residual_attention_block.1} parent=1 // pred_check_branch
      %29 = sbr.rel (0) target = $region29
    $region28: #{residual_attention_block.1} parent=1 // pred_region
      _
    $region29: #{residual_attention_block.1} parent=1 // pred_fallthru
      _
    // Predicated region
    $region30: #{residual_attention_block.1} parent=1 // pred_check
      _
    $region31: #{residual_attention_block.1} parent=1 // pred_check_branch
      %31 = sbr.rel (0) target = $region33
    $region32: #{residual_attention_block.1} parent=1 // pred_region
      _
    $region33: #{residual_attention_block.1} parent=1 // pred_fallthru
      _
    // Predicated region
    $region34: #{residual_attention_block.1} parent=1 // pred_check
      _
    $region35: #{residual_attention_block.1} parent=1 // pred_check_branch
      %33 = sbr.rel (0) target = $region37
    $region36: #{residual_attention_block.1} parent=1 // pred_region
      _
    $region37: #{residual_attention_block.1} parent=1 // pred_fallthru
      _
    // Predicated region
    $region38: #{residual_attention_block.1} parent=1 // pred_check
      _
    $region39: #{residual_attention_block.1} parent=1 // pred_check_branch
      %35 = sbr.rel (0) target = $region41
    $region40: #{residual_attention_block.1} parent=1 // pred_region
      _
    $region41: #{residual_attention_block.1} parent=1 // pred_fallthru
      _
    %v36 = vld [vmem:[%s0] sm:$0xff]
    %v37 = vld [vmem:[%s0 + $0x8] sm:$0xff]
    %v38 = vld [vmem:[%s1] sm:$0xff]
    %v39 = vld [vmem:[%s1 + $0x8] sm:$0x1f]
    %vm40 = vcmask 261120
    %v41 = vsel %vm40, %v36, 0.0
    %42 = vadd.xlane.f32.xlu0 %v41
    %v43 = vpop.xlane.xlu0 %42
    %v44 = vsel %vm40, %v37, 0.0
    %45 = vadd.xlane.f32.xlu0 %v44
    %v46 = vpop.xlane.xlu0 %45
    %v47 = vrcp.pop 32.0
    %v48 = vmul.f32 32.0, %v47
    %v49 = vsub.f32 1.0, %v48
    %v50 = vmul.f32 %v47, %v49
    %v51 = vadd.f32 %v47, %v50
    %vm52 = vweird.f32 %v47
    %v53 = vsel %vm52, %v47, %v51
    %v54 = vmul.f32 %v43, %v53
    %v55 = vmul.f32 %v46, %v53
    %v56 = vsub.f32 %v36, %v54
    %v57 = vsub.f32 %v37, %v55
    %v58 = vmul.f32 %v56, %v56
    %v59 = vmul.f32 %v57, %v57
    %v60 = vsel %vm40, %v58, 0.0
    %61 = vadd.xlane.f32.xlu0 %v60
    %v62 = vpop.xlane.xlu0 %61
    %v63 = vsel %vm40, %v59, 0.0
    %64 = vadd.xlane.f32.xlu0 %v63
    %v65 = vpop.xlane.xlu0 %64
    %v66 = vmul.f32 %v62, %v53
    %v67 = vmul.f32 %v65, %v53
    %v68 = vadd.f32 %v66, 1e-05
    %v69 = vadd.f32 %v67, 1e-05
    %v70 = vrsqrt.pop %v68
    %v71 = vmul.f32 %v70, %v68
    %v72 = vmul.f32 %v71, %v70
    %v73 = vmul.f32 0.5, %v72
    %v74 = vsub.f32 1.5, %v73
    %v75 = vmul.f32 %v70, %v74
    %vm76 = vweird.f32 %v68
    %vm77 = vweird.f32 %v70
    %vm78 = vmor %vm76, %vm77
    %v79 = vsel %vm78, %v70, %v75
    %v80 = vrsqrt.pop %v69
    %v81 = vmul.f32 %v80, %v69
    %v82 = vmul.f32 %v81, %v80
    %v83 = vmul.f32 0.5, %v82
    %v84 = vsub.f32 1.5, %v83
    %v85 = vmul.f32 %v80, %v84
    %vm86 = vweird.f32 %v69
    %vm87 = vweird.f32 %v80
    %vm88 = vmor %vm86, %vm87
    %v89 = vsel %vm88, %v80, %v85
    %v90 = vmul.f32 %v56, %v79
    %v91 = vmul.f32 %v57, %v89
    %v92 = vperm.slane %v38, 0
    %v93 = vmul.f32 %v90, %v92
    %v94 = vmul.f32 %v91, %v92
    %v95 = vperm.slane %v38, 1
    %v96 = vadd.f32 %v93, %v95
    %v97 = vadd.f32 %v94, %v95
    %v98 = vld [vmem:[%s2] sm:$0xff]
    %v99 = vld [vmem:[%s2 + $0x8] sm:$0xff]
    %v100 = vld [vmem:[%s2 + $0x10] sm:$0xff]
    %v101 = vld [vmem:[%s2 + $0x18] sm:$0xff]
    %v102 = vperm.slane %v38, 2
    %v104 = vsel %vm40, %v96, 0
    %v107 = vsel %vm40, %v97, 0
    %109 = vmatpush.msra.mxu0 0.0
    %110 = vmatpush.msra.mxu0 0.0
    %111 = vmatpush.msra.mxu0 0.0
    %112 = vmatpush.msra.mxu0 0.0
    %113 = vmatpush.msra.mxu0 0.0
    %114 = vmatpush.msra.mxu0 0.0
    %115 = vmatpush.msra.mxu0 0.0
    %116 = vmatpush.msra.mxu0 0.0
    %117 = vmatpush.msra.mxu0 0.0
    %118 = vmatpush.msra.mxu0 0.0
    %119 = vmatpush.msra.mxu0 0.0
    %120 = vmatpush.msra.mxu0 0.0
    %121 = vmatpush.msra.mxu0 %v101
    %122 = vmatpush.msra.mxu0 %v100
    %123 = vmatpush.msra.mxu0 %v99
    %124 = vmatpush.msra.mxu0 %v98
    %125 = vmatmul.f32.gmra.mxu0 %v104
    %v126 = vpop.f32.mrf.mxu0
    %v127 = vadd.f32 %v102, %v126
    %128 = vmatmul.f32.gmra.mxu0 %v107
    %v129 = vpop.f32.mrf.mxu0
    %v130 = vadd.f32 %v102, %v129
    %131 = vdwg.mxu0
    %v132 = vld [vmem:[%s3] sm:$0xff]
    %v133 = vld [vmem:[%s3 + $0x8] sm:$0xff]
    %v134 = vld [vmem:[%s3 + $0x10] sm:$0xff]
    %v135 = vld [vmem:[%s3 + $0x18] sm:$0xff]
    %v136 = vperm.slane %v38, 3
    %137 = vmatpush.msra.mxu0 0.0
    %138 = vmatpush.msra.mxu0 0.0
    %139 = vmatpush.msra.mxu0 0.0
    %140 = vmatpush.msra.mxu0 0.0
    %141 = vmatpush.msra.mxu0 0.0
    %142 = vmatpush.msra.mxu0 0.0
    %143 = vmatpush.msra.mxu0 0.0
    %144 = vmatpush.msra.mxu0 0.0
    %145 = vmatpush.msra.mxu0 0.0
    %146 = vmatpush.msra.mxu0 0.0
    %147 = vmatpush.msra.mxu0 0.0
    %148 = vmatpush.msra.mxu0 0.0
    %149 = vmatpush.msra.mxu0 %v135
    %150 = vmatpush.msra.mxu0 %v134
    %151 = vmatpush.msra.mxu0 %v133
    %152 = vmatpush.msra.mxu0 %v132
    %153 = vmatmul.f32.gmra.mxu0 %v104
    %v154 = vpop.f32.mrf.mxu0
    %v155 = vadd.f32 %v136, %v154
    %156 = vmatmul.f32.gmra.mxu0 %v107
    %v157 = vpop.f32.mrf.mxu0
    %v158 = vadd.f32 %v136, %v157
    %159 = vdwg.mxu0
    %v160 = vld [vmem:[%s4] sm:$0xff]
    %v161 = vld [vmem:[%s4 + $0x8] sm:$0xff]
    %v162 = vld [vmem:[%s4 + $0x10] sm:$0xff]
    %v163 = vld [vmem:[%s4 + $0x18] sm:$0xff]
    %v164 = vperm.slane %v38, 4
    %165 = vmatpush.msra.mxu0 0.0
    %166 = vmatpush.msra.mxu0 0.0
    %167 = vmatpush.msra.mxu0 0.0
    %168 = vmatpush.msra.mxu0 0.0
    %169 = vmatpush.msra.mxu0 0.0
    %170 = vmatpush.msra.mxu0 0.0
    %171 = vmatpush.msra.mxu0 0.0
    %172 = vmatpush.msra.mxu0 0.0
    %173 = vmatpush.msra.mxu0 0.0
    %174 = vmatpush.msra.mxu0 0.0
    %175 = vmatpush.msra.mxu0 0.0
    %176 = vmatpush.msra.mxu0 0.0
    %177 = vmatpush.msra.mxu0 %v163
    %178 = vmatpush.msra.mxu0 %v162
    %179 = vmatpush.msra.mxu0 %v161
    %180 = vmatpush.msra.mxu0 %v160
    %181 = vmatmul.f32.gmra.mxu0 %v104
    %v182 = vpop.f32.mrf.mxu0
    %v183 = vadd.f32 %v164, %v182
    %184 = vmatmul.f32.gmra.mxu0 %v107
    %v185 = vpop.f32.mrf.mxu0
    %v186 = vadd.f32 %v164, %v185
    %187 = vdwg.mxu0
    %v188 = vperm.slane %v39, 1
    %v189 = vmul.f32 %v127, %v188
    %v190 = vmul.f32 %v130, %v188
    %v191 = vperm.slane %v39, 2
    %v192 = vmul.f32 %v127, %v191
    %v193 = vmul.f32 %v130, %v191
    %v194 = vperm.slane %v39, 3
    %v195 = vmul.f32 %v127, %v194
    %v196 = vmul.f32 %v130, %v194
    %v197 = vperm.slane %v39, 4
    %v198 = vmul.f32 %v127, %v197
    %v199 = vmul.f32 %v130, %v197
    %v200 = vld [vmem:[%s9] sm:$0xff]
    %v201 = vld [vmem:[%s9 + $0x8] sm:$0xff]
    %v202 = vld [vmem:[%s9 + $0x10] sm:$0xff]
    %v203 = vld [vmem:[%s9 + $0x18] sm:$0xff]
    %v204 = vld [vmem:[%s9 + $0x20] sm:$0xff]
    %v205 = vld [vmem:[%s9 + $0x28] sm:$0xff]
    %v206 = vld [vmem:[%s9 + $0x30] sm:$0xff]
    %v207 = vld [vmem:[%s9 + $0x38] sm:$0xff]
    %v209 = vsel %vm40, %v189, 0
    %v212 = vsel %vm40, %v190, 0
    %v215 = vsel %vm40, %v192, 0
    %v218 = vsel %vm40, %v193, 0
    %v221 = vsel %vm40, %v195, 0
    %v224 = vsel %vm40, %v196, 0
    %v227 = vsel %vm40, %v198, 0
    %v230 = vsel %vm40, %v199, 0
    %v233 = vsel %vm40, %v155, 0
    %v236 = vsel %vm40, %v158, 0
    %238 = vmatpush.xpose.msra.mxu0 0.0
    %239 = vmatpush.xpose.msra.mxu0 0.0
    %240 = vmatpush.xpose.msra.mxu0 0.0
    %241 = vmatpush.xpose.msra.mxu0 0.0
    %242 = vmatpush.xpose.msra.mxu0 0.0
    %243 = vmatpush.xpose.msra.mxu0 0.0
    %244 = vmatpush.xpose.msra.mxu0 0.0
    %245 = vmatpush.xpose.msra.mxu0 0.0
    %246 = vmatpush.xpose.msra.mxu0 0.0
    %247 = vmatpush.xpose.msra.mxu0 0.0
    %248 = vmatpush.xpose.msra.mxu0 0.0
    %249 = vmatpush.xpose.msra.mxu0 0.0
    %250 = vmatpush.xpose.msra.mxu0 0.0
    %251 = vmatpush.xpose.msra.mxu0 0.0
    %252 = vmatpush.xpose.msra.mxu0 %v236
    %253 = vmatpush.xpose.msra.mxu0 %v233
    %254 = vmatmul.f32.gmra.mxu0 %v209
    %v255 = vpop.f32.mrf.mxu0
    %v256 = vadd.f32 %v200, %v255
    %257 = vmatmul.f32.gmra.mxu0 %v212
    %v258 = vpop.f32.mrf.mxu0
    %v259 = vadd.f32 %v201, %v258
    %260 = vmatmul.f32.gmra.mxu0 %v215
    %v261 = vpop.f32.mrf.mxu0
    %v262 = vadd.f32 %v202, %v261
    %263 = vmatmul.f32.gmra.mxu0 %v218
    %v264 = vpop.f32.mrf.mxu0
    %v265 = vadd.f32 %v203, %v264
    %266 = vmatmul.f32.gmra.mxu0 %v221
    %v267 = vpop.f32.mrf.mxu0
    %v268 = vadd.f32 %v204, %v267
    %269 = vmatmul.f32.gmra.mxu0 %v224
    %v270 = vpop.f32.mrf.mxu0
    %v271 = vadd.f32 %v205, %v270
    %272 = vmatmul.f32.gmra.mxu0 %v227
    %v273 = vpop.f32.mrf.mxu0
    %v274 = vadd.f32 %v206, %v273
    %275 = vmatmul.f32.gmra.mxu0 %v230
    %v276 = vpop.f32.mrf.mxu0
    %v277 = vadd.f32 %v207, %v276
    %278 = vdwg.mxu0
    %vm279 = vcmask 130048
    %v280 = vsel %vm279, %v256, -inf
    %281 = vmax.xlane.f32.xlu0 %v280
    %v282 = vpop.xlane.xlu0 %281
    %v283 = vsel %vm279, %v259, -inf
    %284 = vmax.xlane.f32.xlu0 %v283
    %v285 = vpop.xlane.xlu0 %284
    %v286 = vsel %vm279, %v262, -inf
    %287 = vmax.xlane.f32.xlu0 %v286
    %v288 = vpop.xlane.xlu0 %287
    %v289 = vsel %vm279, %v265, -inf
    %290 = vmax.xlane.f32.xlu0 %v289
    %v291 = vpop.xlane.xlu0 %290
    %v292 = vsel %vm279, %v268, -inf
    %293 = vmax.xlane.f32.xlu0 %v292
    %v294 = vpop.xlane.xlu0 %293
    %v295 = vsel %vm279, %v271, -inf
    %296 = vmax.xlane.f32.xlu0 %v295
    %v297 = vpop.xlane.xlu0 %296
    %v298 = vsel %vm279, %v274, -inf
    %299 = vmax.xlane.f32.xlu0 %v298
    %v300 = vpop.xlane.xlu0 %299
    %v301 = vsel %vm279, %v277, -inf
    %302 = vmax.xlane.f32.xlu0 %v301
    %v303 = vpop.xlane.xlu0 %302
    %v304 = vsub.f32 %v256, %v282
    %v305 = vsub.f32 %v259, %v285
    %v306 = vsub.f32 %v262, %v288
    %v307 = vsub.f32 %v265, %v291
    %v308 = vsub.f32 %v268, %v294
    %v309 = vsub.f32 %v271, %v297
    %v310 = vsub.f32 %v274, %v300
    %v311 = vsub.f32 %v277, %v303
    %v312 = vmul.f32 %v304, 1.442695
    %v313 = vpow.pop %v312
    %v314 = vmul.f32 %v305, 1.442695
    %v315 = vpow.pop %v314
    %v316 = vmul.f32 %v306, 1.442695
    %v317 = vpow.pop %v316
    %v318 = vmul.f32 %v307, 1.442695
    %v319 = vpow.pop %v318
    %v320 = vmul.f32 %v308, 1.442695
    %v321 = vpow.pop %v320
    %v322 = vmul.f32 %v309, 1.442695
    %v323 = vpow.pop %v322
    %v324 = vmul.f32 %v310, 1.442695
    %v325 = vpow.pop %v324
    %v326 = vmul.f32 %v311, 1.442695
    %v327 = vpow.pop %v326
    %v328 = vsel %vm279, %v313, 0.0
    %329 = vadd.xlane.f32.xlu0 %v328
    %v330 = vpop.xlane.xlu0 %329
    %v331 = vsel %vm279, %v315, 0.0
    %332 = vadd.xlane.f32.xlu0 %v331
    %v333 = vpop.xlane.xlu0 %332
    %v334 = vsel %vm279, %v317, 0.0
    %335 = vadd.xlane.f32.xlu0 %v334
    %v336 = vpop.xlane.xlu0 %335
    %v337 = vsel %vm279, %v319, 0.0
    %338 = vadd.xlane.f32.xlu0 %v337
    %v339 = vpop.xlane.xlu0 %338
    %v340 = vsel %vm279, %v321, 0.0
    %341 = vadd.xlane.f32.xlu0 %v340
    %v342 = vpop.xlane.xlu0 %341
    %v343 = vsel %vm279, %v323, 0.0
    %344 = vadd.xlane.f32.xlu0 %v343
    %v345 = vpop.xlane.xlu0 %344
    %v346 = vsel %vm279, %v325, 0.0
    %347 = vadd.xlane.f32.xlu0 %v346
    %v348 = vpop.xlane.xlu0 %347
    %v349 = vsel %vm279, %v327, 0.0
    %350 = vadd.xlane.f32.xlu0 %v349
    %v351 = vpop.xlane.xlu0 %350
    %v352 = vrcp.pop %v330
    %v353 = vrcp.pop %v333
    %v354 = vrcp.pop %v336
    %v355 = vrcp.pop %v339
    %v356 = vrcp.pop %v342
    %v357 = vrcp.pop %v345
    %v358 = vrcp.pop %v348
    %v359 = vrcp.pop %v351
    %v360 = vmul.f32 %v313, %v352
    %v361 = vmul.f32 %v315, %v353
    %v362 = vmul.f32 %v317, %v354
    %v363 = vmul.f32 %v319, %v355
    %v364 = vmul.f32 %v321, %v356
    %v365 = vmul.f32 %v323, %v357
    %v366 = vmul.f32 %v325, %v358
    %v367 = vmul.f32 %v327, %v359
    %v369 = vsel %vm279, %v360, 0
    %v372 = vsel %vm279, %v361, 0
    %v375 = vsel %vm279, %v362, 0
    %v378 = vsel %vm279, %v363, 0
    %v381 = vsel %vm279, %v364, 0
    %v384 = vsel %vm279, %v365, 0
    %v387 = vsel %vm279, %v366, 0
    %v390 = vsel %vm279, %v367, 0
    %392 = vmatpush.msra.mxu0 0.0
    %393 = vmatpush.msra.mxu0 0.0
    %394 = vmatpush.msra.mxu0 0.0
    %395 = vmatpush.msra.mxu0 0.0
    %396 = vmatpush.msra.mxu0 0.0
    %397 = vmatpush.msra.mxu0 0.0
    %398 = vmatpush.msra.mxu0 0.0
    %399 = vmatpush.msra.mxu0 0.0
    %400 = vmatpush.msra.mxu0 0.0
    %401 = vmatpush.msra.mxu0 0.0
    %402 = vmatpush.msra.mxu0 0.0
    %403 = vmatpush.msra.mxu0 0.0
    %404 = vmatpush.msra.mxu0 0.0
    %405 = vmatpush.msra.mxu0 0.0
    %406 = vmatpush.msra.mxu0 %v186
    %407 = vmatpush.msra.mxu0 %v183
    %408 = vmatmul.f32.gmra.mxu0 %v369
    %v409 = vpop.f32.mrf.mxu0
    %v410 = vadd.f32 0.0, %v409
    %411 = vmatmul.f32.gmra.mxu0 %v372
    %v412 = vpop.f32.mrf.mxu0
    %v413 = vadd.f32 0.0, %v412
    %414 = vmatmul.f32.gmra.mxu0 %v375
    %v415 = vpop.f32.mrf.mxu0
    %v416 = vadd.f32 0.0, %v415
    %417 = vmatmul.f32.gmra.mxu0 %v378
    %v418 = vpop.f32.mrf.mxu0
    %v419 = vadd.f32 0.0, %v418
    %420 = vmatmul.f32.gmra.mxu0 %v381
    %v421 = vpop.f32.mrf.mxu0
    %v422 = vadd.f32 0.0, %v421
    %423 = vmatmul.f32.gmra.mxu0 %v384
    %v424 = vpop.f32.mrf.mxu0
    %v425 = vadd.f32 0.0, %v424
    %426 = vmatmul.f32.gmra.mxu0 %v387
    %v427 = vpop.f32.mrf.mxu0
    %v428 = vadd.f32 0.0, %v427
    %429 = vmatmul.f32.gmra.mxu0 %v390
    %v430 = vpop.f32.mrf.mxu0
    %v431 = vadd.f32 0.0, %v430
    %432 = vdwg.mxu0
    %v433 = vmul.f32 %v410, %v188
    %v434 = vmul.f32 %v413, %v188
    %v435 = vmul.f32 %v416, %v191
    %v436 = vmul.f32 %v419, %v191
    %v437 = vadd.f32 %v433, %v435
    %v438 = vadd.f32 %v434, %v436
    %v439 = vmul.f32 %v422, %v194
    %v440 = vmul.f32 %v425, %v194
    %v441 = vadd.f32 %v437, %v439
    %v442 = vadd.f32 %v438, %v440
    %v443 = vmul.f32 %v428, %v197
    %v444 = vmul.f32 %v431, %v197
    %v445 = vadd.f32 %v441, %v443
    %v446 = vadd.f32 %v442, %v444
    %v447 = vld [vmem:[%s5] sm:$0xff]
    %v448 = vld [vmem:[%s5 + $0x8] sm:$0xff]
    %v449 = vld [vmem:[%s5 + $0x10] sm:$0xff]
    %v450 = vld [vmem:[%s5 + $0x18] sm:$0xff]
    %v451 = vperm.slane %v38, 5
    %v453 = vsel %vm40, %v445, 0
    %v456 = vsel %vm40, %v446, 0
    %458 = vmatpush.msra.mxu0 0.0
    %459 = vmatpush.msra.mxu0 0.0
    %460 = vmatpush.msra.mxu0 0.0
    %461 = vmatpush.msra.mxu0 0.0
    %462 = vmatpush.msra.mxu0 0.0
    %463 = vmatpush.msra.mxu0 0.0
    %464 = vmatpush.msra.mxu0 0.0
    %465 = vmatpush.msra.mxu0 0.0
    %466 = vmatpush.msra.mxu0 0.0
    %467 = vmatpush.msra.mxu0 0.0
    %468 = vmatpush.msra.mxu0 0.0
    %469 = vmatpush.msra.mxu0 0.0
    %470 = vmatpush.msra.mxu0 %v450
    %471 = vmatpush.msra.mxu0 %v449
    %472 = vmatpush.msra.mxu0 %v448
    %473 = vmatpush.msra.mxu0 %v447
    %474 = vmatmul.f32.gmra.mxu0 %v453
    %v475 = vpop.f32.mrf.mxu0
    %v476 = vadd.f32 %v451, %v475
    %477 = vmatmul.f32.gmra.mxu0 %v456
    %v478 = vpop.f32.mrf.mxu0
    %v479 = vadd.f32 %v451, %v478
    %480 = vdwg.mxu0
    %v481 = vadd.f32 %v36, %v476
    %v482 = vadd.f32 %v37, %v479
    %v483 = vsel %vm40, %v481, 0.0
    %484 = vadd.xlane.f32.xlu0 %v483
    %v485 = vpop.xlane.xlu0 %484
    %v486 = vsel %vm40, %v482, 0.0
    %487 = vadd.xlane.f32.xlu0 %v486
    %v488 = vpop.xlane.xlu0 %487
    %v489 = vmul.f32 %v485, %v53
    %v490 = vmul.f32 %v488, %v53
    %v491 = vsub.f32 %v481, %v489
    %v492 = vsub.f32 %v482, %v490
    %v493 = vmul.f32 %v491, %v491
    %v494 = vmul.f32 %v492, %v492
    %v495 = vsel %vm40, %v493, 0.0
    %496 = vadd.xlane.f32.xlu0 %v495
    %v497 = vpop.xlane.xlu0 %496
    %v498 = vsel %vm40, %v494, 0.0
    %499 = vadd.xlane.f32.xlu0 %v498
    %v500 = vpop.xlane.xlu0 %499
    %v501 = vmul.f32 %v497, %v53
    %v502 = vmul.f32 %v500, %v53
    %v503 = vadd.f32 %v501, 1e-05
    %v504 = vadd.f32 %v502, 1e-05
    %v505 = vrsqrt.pop %v503
    %v506 = vmul.f32 %v505, %v503
    %v507 = vmul.f32 %v506, %v505
    %v508 = vmul.f32 0.5, %v507
    %v509 = vsub.f32 1.5, %v508
    %v510 = vmul.f32 %v505, %v509
    %vm511 = vweird.f32 %v503
    %vm512 = vweird.f32 %v505
    %vm513 = vmor %vm511, %vm512
    %v514 = vsel %vm513, %v505, %v510
    %v515 = vrsqrt.pop %v504
    %v516 = vmul.f32 %v515, %v504
    %v517 = vmul.f32 %v516, %v515
    %v518 = vmul.f32 0.5, %v517
    %v519 = vsub.f32 1.5, %v518
    %v520 = vmul.f32 %v515, %v519
    %vm521 = vweird.f32 %v504
    %vm522 = vweird.f32 %v515
    %vm523 = vmor %vm521, %vm522
    %v524 = vsel %vm523, %v515, %v520
    %v525 = vmul.f32 %v491, %v514
    %v526 = vmul.f32 %v492, %v524
    %v527 = vperm.slane %v38, 6
    %v528 = vmul.f32 %v525, %v527
    %v529 = vmul.f32 %v526, %v527
    %v530 = vperm.slane %v38, 7
    %v531 = vadd.f32 %v528, %v530
    %v532 = vadd.f32 %v529, %v530
    %v533 = vld [vmem:[%s6] sm:$0xff]
    %v534 = vld [vmem:[%s6 + $0x8] sm:$0xff]
    %v535 = vld [vmem:[%s6 + $0x10] sm:$0xff]
    %v536 = vld [vmem:[%s6 + $0x18] sm:$0xff]
    %v537 = vld [vmem:[%s7] sm:$0x1]
    %v539 = vperm.slane %v537, 0
    %v542 = vsel %vm40, %v531, 0
    %v545 = vsel %vm40, %v532, 0
    %547 = vmatpush.msra.mxu0 0.0
    %548 = vmatpush.msra.mxu0 0.0
    %549 = vmatpush.msra.mxu0 0.0
    %550 = vmatpush.msra.mxu0 0.0
    %551 = vmatpush.msra.mxu0 0.0
    %552 = vmatpush.msra.mxu0 0.0
    %553 = vmatpush.msra.mxu0 0.0
    %554 = vmatpush.msra.mxu0 0.0
    %555 = vmatpush.msra.mxu0 0.0
    %556 = vmatpush.msra.mxu0 0.0
    %557 = vmatpush.msra.mxu0 0.0
    %558 = vmatpush.msra.mxu0 0.0
    %559 = vmatpush.msra.mxu0 %v536
    %560 = vmatpush.msra.mxu0 %v535
    %561 = vmatpush.msra.mxu0 %v534
    %562 = vmatpush.msra.mxu0 %v533
    %563 = vmatmul.f32.gmra.mxu0 %v542
    %v564 = vpop.f32.mrf.mxu0
    %v565 = vadd.f32 %v539, %v564
    %566 = vmatmul.f32.gmra.mxu0 %v545
    %v567 = vpop.f32.mrf.mxu0
    %v568 = vadd.f32 %v539, %v567
    %569 = vdwg.mxu0
    %v570 = vmul.f32 %v565, 1.702
    %v571 = vmul.f32 %v568, 1.702
    %v572 = vxor.u32 %v570, 2147483648
    %v573 = vxor.u32 %v571, 2147483648
    %v574 = vmul.f32 %v572, 1.442695
    %v575 = vpow.pop %v574
    %v576 = vmul.f32 %v573, 1.442695
    %v577 = vpow.pop %v576
    %v578 = vadd.f32 %v575, 1.0
    %v579 = vadd.f32 %v577, 1.0
    %v580 = vrcp.pop %v578
    %v581 = vmul.f32 %v578, %v580
    %v582 = vsub.f32 1.0, %v581
    %v583 = vmul.f32 %v580, %v582
    %v584 = vadd.f32 %v580, %v583
    %vm585 = vweird.f32 %v578
    %vm586 = vweird.f32 %v580
    %vm587 = vmor %vm585, %vm586
    %v588 = vsel %vm587, %v580, %v584
    %v589 = vand.u32 2147483647, %v578
    %vm590 = vcmp.eq.f32.partialorder %v589, 8.507059e+37
    %v591 = vand.u32 %v578, 2147483648
    %v592 = vor.u32 1.1754944e-38, %v591
    %v593 = vsel %vm590, %v592, %v588
    %v594 = vmul.f32 1.0, %v593
    %v595 = vrcp.pop %v579
    %v596 = vmul.f32 %v579, %v595
    %v597 = vsub.f32 1.0, %v596
    %v598 = vmul.f32 %v595, %v597
    %v599 = vadd.f32 %v595, %v598
    %vm600 = vweird.f32 %v579
    %vm601 = vweird.f32 %v595
    %vm602 = vmor %vm600, %vm601
    %v603 = vsel %vm602, %v595, %v599
    %v604 = vand.u32 2147483647, %v579
    %vm605 = vcmp.eq.f32.partialorder %v604, 8.507059e+37
    %v606 = vand.u32 %v579, 2147483648
    %v607 = vor.u32 1.1754944e-38, %v606
    %v608 = vsel %vm605, %v607, %v603
    %v609 = vmul.f32 1.0, %v608
    %v610 = vmul.f32 %v565, %v594
    %v611 = vmul.f32 %v568, %v609
    %v612 = vld [vmem:[%s8] sm:$0xff]
    %v613 = vld [vmem:[%s8 + $0x8] sm:$0xff]
    %v614 = vld [vmem:[%s8 + $0x10] sm:$0xff]
    %v615 = vld [vmem:[%s8 + $0x18] sm:$0xff]
    %v616 = vld [vmem:[%s8 + $0x20] sm:$0xff]
    %v617 = vld [vmem:[%s8 + $0x28] sm:$0xff]
    %v618 = vld [vmem:[%s8 + $0x30] sm:$0xff]
    %v619 = vld [vmem:[%s8 + $0x38] sm:$0xff]
    %v620 = vld [vmem:[%s8 + $0x40] sm:$0xff]
    %v621 = vld [vmem:[%s8 + $0x48] sm:$0xff]
    %v622 = vld [vmem:[%s8 + $0x50] sm:$0xff]
    %v623 = vld [vmem:[%s8 + $0x58] sm:$0xff]
    %v624 = vld [vmem:[%s8 + $0x60] sm:$0xff]
    %v625 = vld [vmem:[%s8 + $0x68] sm:$0xff]
    %v626 = vld [vmem:[%s8 + $0x70] sm:$0xff]
    %v627 = vld [vmem:[%s8 + $0x78] sm:$0xff]
    %v628 = vperm.slane %v39, 0
    %629 = vmatpush.msra.mxu0 %v627
    %630 = vmatpush.msra.mxu0 %v626
    %631 = vmatpush.msra.mxu0 %v625
    %632 = vmatpush.msra.mxu0 %v624
    %633 = vmatpush.msra.mxu0 %v623
    %634 = vmatpush.msra.mxu0 %v622
    %635 = vmatpush.msra.mxu0 %v621
    %636 = vmatpush.msra.mxu0 %v620
    %637 = vmatpush.msra.mxu0 %v619
    %638 = vmatpush.msra.mxu0 %v618
    %639 = vmatpush.msra.mxu0 %v617
    %640 = vmatpush.msra.mxu0 %v616
    %641 = vmatpush.msra.mxu0 %v615
    %642 = vmatpush.msra.mxu0 %v614
    %643 = vmatpush.msra.mxu0 %v613
    %644 = vmatpush.msra.mxu0 %v612
    %645 = vmatmul.f32.gmra.mxu0 %v610
    %v646 = vpop.f32.mrf.mxu0
    %v647 = vadd.f32 %v628, %v646
    %648 = vmatmul.f32.gmra.mxu0 %v611
    %v649 = vpop.f32.mrf.mxu0
    %v650 = vadd.f32 %v628, %v649
    %651 = vdwg.mxu0
    %v652 = vadd.f32 %v481, %v647
    %v653 = vadd.f32 %v482, %v650
    %654 = vst.msk [vmem:[#allocation2] sm:$0xff] %vm40, %v652
    %655 = vst.msk [vmem:[#allocation2 + $0x8] sm:$0xff] %vm40, %v653
    // Predicated region
    $region42: #{residual_attention_block.1} parent=1 // pred_check
      _
    $region43: #{residual_attention_block.1} parent=1 // pred_check_branch
      %657 = sbr.rel (0) target = $region45
    $region44: #{residual_attention_block.1} parent=1 // pred_region
      %659 = vsyncadd [#allocation3], 0
      %s660 = sshll.u32 [#allocation2], 4
      %s661 = int_to_ptr.vmem [resolvable:$true] %s660
      %s662 = sshll.u32 %s10, 4
      %s663 = int_to_ptr.hbm [resolvable:$true] %s662
      %668 = dma.vmem_to_hbm [thread:$0]  %s661, 256, %s663, [#allocation3], 128, 128, 8
    $region45: #{residual_attention_block.1} parent=1 // pred_fallthru
      _
    // Predicated region
    $region46: #{residual_attention_block.1} parent=1 // pred_check
      _
    $region47: #{residual_attention_block.1} parent=1 // pred_check_branch
      %670 = sbr.rel (0) target = $region49
    $region48: #{residual_attention_block.1} parent=1 // pred_region
      %672 = dma.done [#allocation3], 256
    $region49: #{residual_attention_block.1} parent=1 // pred_fallthru
      _
    %673 = vsyncpa [#allocation3], 1

</llo_original>
